<compile_context>
chip_gen: v5e
topology: v5e:2x2
jax: 0.10.0
libtpu: 0.0.40
codegen_flags: <defaults>
</compile_context>

<pallas_src>
import functools

import numpy as np
import jax
import jax.numpy as jnp
from jax.experimental import pallas as pl
from jax.experimental.pallas import tpu as pltpu


LANE = 128


def _round_up(n, m):
    return ((n + m - 1) // m) * m


def _pick_tile_m(M, tile_m=512):
    """Row-tile: multiple of 256 (>=2 grid steps when M allows), capped at tile_m."""
    if M <= 256:
        return _round_up(max(M, 8), 16)
    tm = min(tile_m, 256 * max(1, M // 512))
    return max(256, (tm // 256) * 256)


def _vmem_limit_bytes(in_block_bytes, out_block_bytes):
    # double-buffered inputs + output, plus headroom for f32 intermediates / compiler
    # temps.  Clamped to 48 MiB so it is safe on v7x (64 MiB VMEM) and below the default
    # ceiling question marks on v5e/v6e (128 MiB).
    footprint = 2 * (in_block_bytes + out_block_bytes)
    limit = footprint + 16 * 1024 * 1024
    return int(min(max(limit, 32 * 1024 * 1024), 48 * 1024 * 1024))


# ---------------------------------------------------------------------------
# Pallas kernels
# ---------------------------------------------------------------------------
def _conv_bn_kernel(x_ref, w_ref, s_ref, b_ref, o_ref, *, apply_relu):
    """One wide-K MXU matmul + folded-BN epilogue (+ReLU)."""
    y = jnp.dot(x_ref[...], w_ref[...], preferred_element_type=jnp.float32)
    y = y * s_ref[...] + b_ref[...]
    if apply_relu:
        y = jnp.maximum(y, 0.0)
    o_ref[...] = y.astype(o_ref.dtype)


def _bottleneck_tail_kernel(*refs, mode):
    """branch2.b (wide-K conv+BN+ReLU) -> branch2.c (1x1 conv+BN) -> +shortcut -> ReLU."""
    if mode == "proj":
        xb, wb, sb, bb, wc, sc, bc, xs, w1, s1, b1, o_ref = refs
    else:  # identity residual
        xb, wb, sb, bb, wc, sc, bc, res, o_ref = refs

    h = jnp.dot(xb[...], wb[...], preferred_element_type=jnp.float32)
    h = jnp.maximum(h * sb[...] + bb[...], 0.0)                     # branch2.b BN+ReLU

    y = jnp.dot(h.astype(wc.dtype), wc[...], preferred_element_type=jnp.float32)
    y = y * sc[...] + bc[...]                                       # branch2.c BN

    if mode == "proj":
        y2 = jnp.dot(xs[...], w1[...], preferred_element_type=jnp.float32)
        y = y + (y2 * s1[...] + b1[...])                            # branch1 conv + BN
    else:
        y = y + res[...].astype(jnp.float32)                        # identity shortcut

    o_ref[...] = jnp.maximum(y, 0.0).astype(o_ref.dtype)            # final ReLU


# ---------------------------------------------------------------------------
# Pallas-call wrappers
# ---------------------------------------------------------------------------
def conv_bn_act(x, w, scale, bias, *, apply_relu, out_dtype,
                tile_m=512, compute_dtype=jnp.bfloat16):
    """x:(M,K) @ w:(K,Cout) * scale + bias (+ReLU).  K is padded to 128 by the caller."""
    M, K = x.shape
    Cout = w.shape[1]
    tm = _pick_tile_m(M, tile_m)
    M_pad = _round_up(M, tm)
    if M_pad != M:
        x = jnp.pad(x, ((0, M_pad - M), (0, 0)))

    x = x.astype(compute_dtype)
    w = w.astype(compute_dtype)
    scale = scale.reshape(1, Cout).astype(jnp.float32)
    bias = bias.reshape(1, Cout).astype(jnp.float32)

    out_isz = np.dtype(out_dtype).itemsize
    in_blk = tm * K * 2 + K * Cout * 2 + 2 * Cout * 4
    out_blk = tm * Cout * out_isz
    cost = pl.CostEstimate(
        flops=2 * M_pad * K * Cout,
        transcendentals=0,
        bytes_accessed=M_pad * K * 2 + K * Cout * 2 + M_pad * Cout * out_isz,
    )

    kernel = functools.partial(_conv_bn_kernel, apply_relu=apply_relu)
    out = pl.pallas_call(
        kernel,
        out_shape=jax.ShapeDtypeStruct((M_pad, Cout), out_dtype),
        grid=(M_pad // tm,),
        in_specs=[
            pl.BlockSpec((tm, K), lambda i: (i, 0)),
            pl.BlockSpec((K, Cout), lambda i: (0, 0)),
            pl.BlockSpec((1, Cout), lambda i: (0, 0)),
            pl.BlockSpec((1, Cout), lambda i: (0, 0)),
        ],
        out_specs=pl.BlockSpec((tm, Cout), lambda i: (i, 0)),
        compiler_params=pltpu.CompilerParams(
            dimension_semantics=("parallel",),
            vmem_limit_bytes=_vmem_limit_bytes(in_blk, out_blk),
        ),
        cost_estimate=cost,
    )(x, w, scale, bias)
    return out[:M] if M_pad != M else out


def bottleneck_tail(xb, wb, sb, bb, wc, sc, bc, shortcut, *, out_dtype,
                    tile_m=512, compute_dtype=jnp.bfloat16):
    """Fused branch2.b + branch2.c + shortcut + final ReLU."""
    M, Kb = xb.shape
    Cmid = wb.shape[1]
    Cout = wc.shape[1]
    mode = shortcut[0]

    tm = _pick_tile_m(M, tile_m)
    M_pad = _round_up(M, tm)

    def pad_rows(a):
        return a if a.shape[0] == M_pad else jnp.pad(a, ((0, M_pad - a.shape[0]), (0, 0)))

    args = [
        pad_rows(xb).astype(compute_dtype),
        wb.astype(compute_dtype),
        sb.reshape(1, Cmid).astype(jnp.float32),
        bb.reshape(1, Cmid).astype(jnp.float32),
        wc.astype(compute_dtype),
        sc.reshape(1, Cout).astype(jnp.float32),
        bc.reshape(1, Cout).astype(jnp.float32),
    ]
    in_specs = [
        pl.BlockSpec((tm, Kb), lambda i: (i, 0)),
        pl.BlockSpec((Kb, Cmid), lambda i: (0, 0)),
        pl.BlockSpec((1, Cmid), lambda i: (0, 0)),
        pl.BlockSpec((1, Cmid), lambda i: (0, 0)),
        pl.BlockSpec((Cmid, Cout), lambda i: (0, 0)),
        pl.BlockSpec((1, Cout), lambda i: (0, 0)),
        pl.BlockSpec((1, Cout), lambda i: (0, 0)),
    ]

    out_isz = np.dtype(out_dtype).itemsize
    flops = 2 * M_pad * Kb * Cmid + 2 * M_pad * Cmid * Cout
    bytes_accessed = (M_pad * Kb * 2 + Kb * Cmid * 2 + Cmid * Cout * 2
                      + M_pad * Cout * out_isz)
    in_blk = (tm * Kb * 2 + Kb * Cmid * 2 + Cmid * Cout * 2
              + 2 * Cmid * 4 + 2 * Cout * 4)

    if mode == "proj":
        _, xs, w1, s1, b1 = shortcut
        Kp = xs.shape[1]
        args += [
            pad_rows(xs).astype(compute_dtype),
            w1.astype(compute_dtype),
            s1.reshape(1, Cout).astype(jnp.float32),
            b1.reshape(1, Cout).astype(jnp.float32),
        ]
        in_specs += [
            pl.BlockSpec((tm, Kp), lambda i: (i, 0)),
            pl.BlockSpec((Kp, Cout), lambda i: (0, 0)),
            pl.BlockSpec((1, Cout), lambda i: (0, 0)),
            pl.BlockSpec((1, Cout), lambda i: (0, 0)),
        ]
        flops += 2 * M_pad * Kp * Cout
        bytes_accessed += M_pad * Kp * 2 + Kp * Cout * 2
        in_blk += tm * Kp * 2 + Kp * Cout * 2 + 2 * Cout * 4
    else:
        _, res = shortcut
        args.append(pad_rows(res).astype(compute_dtype))
        in_specs.append(pl.BlockSpec((tm, Cout), lambda i: (i, 0)))
        bytes_accessed += M_pad * Cout * 2
        in_blk += tm * Cout * 2

    out_blk = tm * Cout * out_isz
    kernel = functools.partial(_bottleneck_tail_kernel, mode=mode)
    out = pl.pallas_call(
        kernel,
        out_shape=jax.ShapeDtypeStruct((M_pad, Cout), out_dtype),
        grid=(M_pad // tm,),
        in_specs=in_specs,
        out_specs=pl.BlockSpec((tm, Cout), lambda i: (i, 0)),
        compiler_params=pltpu.CompilerParams(
            dimension_semantics=("parallel",),
            vmem_limit_bytes=_vmem_limit_bytes(in_blk, out_blk),
        ),
        cost_estimate=pl.CostEstimate(flops=flops, transcendentals=0,
                                      bytes_accessed=bytes_accessed),
    )(*args)
    return out[:M] if M_pad != M else out


# ---------------------------------------------------------------------------
# Parameter init (deterministic, synthetic) and BN folding
# ---------------------------------------------------------------------------
def fold_bn(gamma, beta, mean, var, eps):
    scale = gamma / jnp.sqrt(var + eps)
    bias = beta - mean * scale
    return scale, bias


def init_resblock_params(key, dim_in, dim_out, dim_inner, temp_kernel_size, has_branch1):
    keys = jax.random.split(key, 8)

    def w(k, shape):
        return 0.1 * jax.random.normal(k, shape, jnp.float32)

    def bn(k, c):
        k1, k2, k3, k4 = jax.random.split(k, 4)
        gamma = 1.0 + 0.1 * jax.random.normal(k1, (c,), jnp.float32)
        beta = 0.1 * jax.random.normal(k2, (c,), jnp.float32)
        mean = 0.1 * jax.random.normal(k3, (c,), jnp.float32)
        var = jnp.abs(jax.random.normal(k4, (c,), jnp.float32)) + 0.5
        return gamma, beta, mean, var

    kt = temp_kernel_size
    p = {
        # BottleneckTransform weights, PyTorch layout (Cout, Cin, kT, kH, kW)
        "wa_pt": w(keys[0], (dim_inner, dim_in, kt, 1, 1)),
        "bna": bn(keys[1], dim_inner),
        "wb_pt": w(keys[2], (dim_inner, dim_inner, 1, 3, 3)),
        "bnb": bn(keys[3], dim_inner),
        "wc_pt": w(keys[4], (dim_out, dim_inner, 1, 1, 1)),
        "bnc": bn(keys[5], dim_out),
    }
    if has_branch1:
        p["w1_pt"] = w(keys[6], (dim_out, dim_in, 1, 1, 1))
        p["bn1"] = bn(keys[7], dim_out)
    return p


# ---------------------------------------------------------------------------
# ResBlock forward (Pallas path)
# ---------------------------------------------------------------------------
def res_block_forward_pallas(x_ncthw, params, *, temp_kernel_size, stride, dilation,
                             eps=1e-5, out_dtype=jnp.float32):
    N, Cin, T, H, W = x_ncthw.shape
    kt, s, d = temp_kernel_size, stride, dilation
    has_branch1 = "w1_pt" in params
    dim_inner = params["wa_pt"].shape[0]
    dim_out = params["wc_pt"].shape[0]

    if not has_branch1 and (s != 1 or Cin != dim_out):
        raise ValueError("identity shortcut requires stride == 1 and dim_in == dim_out")

    Ho = (H - 1) // s + 1
    Wo = (W - 1) // s + 1
    M_in = N * T * H * W
    M_out = N * T * Ho * Wo
    Cp_out = _round_up(dim_out, LANE)

    def fold(bnp):
        return fold_bn(*bnp, eps)

    # channels-last + early bf16 cast (halves all slab-building HBM traffic)
    x_cl = jnp.transpose(x_ncthw, (0, 2, 3, 4, 1)).astype(jnp.bfloat16)   # (N,T,H,W,Cin)

    # ---- branch2.a: [kt,1,1] conv, stride 1, temporal pad kt//2, + BN + ReLU ----------
    Ka = kt * Cin
    Ka_pad = _round_up(Ka, LANE)
    pad_t = kt // 2
    xpt = jnp.pad(x_cl, ((0, 0), (pad_t, pad_t), (0, 0), (0, 0), (0, 0)))
    taps_a = [xpt[:, k:k + T] for k in range(kt)]           # unpadded channel dim per tap
    if Ka_pad > Ka:
        taps_a.append(jnp.zeros((N, T, H, W, Ka_pad - Ka), x_cl.dtype))
    slab_a = jnp.concatenate(taps_a, axis=-1).reshape(M_in, Ka_pad)

    wa = jnp.transpose(params["wa_pt"][:, :, :, 0, 0], (2, 1, 0)).reshape(Ka, dim_inner)
    wa = jnp.pad(wa, ((0, Ka_pad - Ka), (0, 0)))
    sa, ba = fold(params["bna"])
    a_out = conv_bn_act(slab_a, wa, sa, ba, apply_relu=True, out_dtype=jnp.bfloat16)
    # a_out: (M_in, dim_inner) bf16 with *unpadded* channels

    # ---- branch2.b: [1,3,3] conv, stride s, dilation d, spatial pad d ----------------
    Kb = 9 * dim_inner
    Kb_pad = _round_up(Kb, LANE)
    a5 = a_out.reshape(N, T, H, W, dim_inner)
    xps = jnp.pad(a5, ((0, 0), (0, 0), (d, d), (d, d), (0, 0)))
    taps_b = []
    for dh in range(3):
        for dw in range(3):
            taps_b.append(xps[:, :,
                              dh * d: dh * d + (Ho - 1) * s + 1: s,
                              dw * d: dw * d + (Wo - 1) * s + 1: s, :])
    if Kb_pad > Kb:
        taps_b.append(jnp.zeros((N, T, Ho, Wo, Kb_pad - Kb), a_out.dtype))
    slab_b = jnp.concatenate(taps_b, axis=-1).reshape(M_out, Kb_pad)

    wb = jnp.transpose(params["wb_pt"][:, :, 0, :, :], (2, 3, 1, 0)).reshape(Kb, dim_inner)
    wb = jnp.pad(wb, ((0, Kb_pad - Kb), (0, 0)))
    sb, bb = fold(params["bnb"])

    # ---- branch2.c ([1,1,1] conv + BN) + shortcut + final ReLU, fused into b kernel ---
    wc = jnp.transpose(params["wc_pt"][:, :, 0, 0, 0], (1, 0))           # (dim_inner, dim_out)
    wc = jnp.pad(wc, ((0, 0), (0, Cp_out - dim_out)))
    sc, bc = fold(params["bnc"])
    sc = jnp.pad(sc, (0, Cp_out - dim_out))
    bc = jnp.pad(bc, (0, Cp_out - dim_out))

    x_s = x_cl[:, :, ::s, ::s, :].reshape(M_out, Cin)                    # strided shortcut rows

    if has_branch1:
        w1 = jnp.transpose(params["w1_pt"][:, :, 0, 0, 0], (1, 0))       # (Cin, dim_out)
        w1 = jnp.pad(w1, ((0, 0), (0, Cp_out - dim_out)))
        s1, b1 = fold(params["bn1"])
        s1 = jnp.pad(s1, (0, Cp_out - dim_out))
        b1 = jnp.pad(b1, (0, Cp_out - dim_out))
        shortcut = ("proj", x_s, w1, s1, b1)
    else:
        # identity shortcut (stride == 1, Cin == dim_out); pad channels to Cp_out
        res = jnp.pad(x_s, ((0, 0), (0, Cp_out - dim_out)))
        shortcut = ("identity", res)

    out = bottleneck_tail(slab_b, wb, sb, bb, wc, sc, bc, shortcut, out_dtype=out_dtype)

    out5 = out.reshape(N, T, Ho, Wo, Cp_out)[..., :dim_out]
    return jnp.transpose(out5, (0, 4, 1, 2, 3))                          # back to NCDHW


# ---------------------------------------------------------------------------
# Pure-JAX reference (lax conv, f32) for correctness check
# ---------------------------------------------------------------------------
def res_block_forward_ref(x, params, *, temp_kernel_size, stride, dilation, eps=1e-5):
    def conv3d(x, w, strides=(1, 1, 1), padding=((0, 0), (0, 0), (0, 0)),
               rhs_dilation=(1, 1, 1)):
        return jax.lax.conv_general_dilated(
            x, w, window_strides=strides, padding=padding, rhs_dilation=rhs_dilation,
            dimension_numbers=("NCDHW", "OIDHW", "NCDHW"))

    def bn(x, bn_params):
        gamma, beta, mean, var = bn_params
        scale = gamma / jnp.sqrt(var + eps)
        bias = beta - mean * scale
        return x * scale[None, :, None, None, None] + bias[None, :, None, None, None]

    kt, s, d = temp_kernel_size, stride, dilation
    a = conv3d(x, params["wa_pt"], (1, 1, 1), ((kt // 2, kt // 2), (0, 0), (0, 0)))
    a = jax.nn.relu(bn(a, params["bna"]))
    b = conv3d(a, params["wb_pt"], (1, s, s), ((0, 0), (d, d), (d, d)), (1, d, d))
    b = jax.nn.relu(bn(b, params["bnb"]))
    c = bn(conv3d(b, params["wc_pt"]), params["bnc"])
    if "w1_pt" in params:
        shortcut = bn(conv3d(x, params["w1_pt"], (1, s, s)), params["bn1"])
    else:
        shortcut = x
    return jax.nn.relu(shortcut + c)


# ---------------------------------------------------------------------------
if __name__ == "__main__":
    key = jax.random.PRNGKey(0)
    kx1, kx2, kp1, kp2 = jax.random.split(key, 4)

    N, T, H, W = 2, 4, 8, 8
    kt, stride, dilation = 3, 1, 1

    # Config 1: dim_in != dim_out -> projection shortcut (branch1 + branch1_bn), fused.
    dim_in, dim_out, dim_inner = 4, 8, 4
    x1 = jax.random.normal(kx1, (N, dim_in, T, H, W), jnp.float32)
    p1 = init_resblock_params(kp1, dim_in, dim_out, dim_inner, kt, has_branch1=True)
    y1 = jax.block_until_ready(
        res_block_forward_pallas(x1, p1, temp_kernel_size=kt, stride=stride, dilation=dilation))
    r1 = res_block_forward_ref(x1, p1, temp_kernel_size=kt, stride=stride, dilation=dilation)

    # Config 2: dim_in == dim_out, stride 1 -> identity shortcut (x + branch2(x)).
    x2 = jax.random.normal(kx2, (N, dim_out, T, H, W), jnp.float32)
    p2 = init_resblock_params(kp2, dim_out, dim_out, dim_inner, kt, has_branch1=False)
    y2 = jax.block_until_ready(
        res_block_forward_pallas(x2, p2, temp_kernel_size=kt, stride=stride, dilation=dilation))
    r2 = res_block_forward_ref(x2, p2, temp_kernel_size=kt, stride=stride, dilation=dilation)

    # bf16 matmul operands (+ bf16 residual) with f32 accumulation -> loose tolerance
    # vs. the f32 lax reference.
    assert jnp.allclose(y1, r1, atol=5e-2, rtol=5e-2), float(jnp.max(jnp.abs(y1 - r1)))
    assert jnp.allclose(y2, r2, atol=5e-2, rtol=5e-2), float(jnp.max(jnp.abs(y2 - r2)))
    print("KERNEL_OK")
</pallas_src>

<mosaic_0001>
module attributes {stable_mosaic.version = 11 : i64} {
  func.func @_conv_bn_kernel(%arg0: i32, %arg1: memref<256x128xbf16, #tpu.memory_space<vmem>>, %arg2: memref<128x4xbf16, #tpu.memory_space<vmem>>, %arg3: memref<1x4xf32, #tpu.memory_space<vmem>>, %arg4: memref<1x4xf32, #tpu.memory_space<vmem>>, %arg5: memref<256x4xbf16, #tpu.memory_space<vmem>>) attributes {dimension_semantics = [#tpu.dimension_semantics<parallel>], iteration_bounds = array<i64: 2>, scalar_prefetch = 0 : i64, scratch_operands = 0 : i64, tpu.core_type = #tpu.core_type<tc>, window_params = [{transform_indices = @transform_0, window_bounds = array<i64: 256, 128>}, {pipeline_mode = #tpu.pipeline_mode<synchronous>, transform_indices = @transform_1, window_bounds = array<i64: 128, 4>}, {pipeline_mode = #tpu.pipeline_mode<synchronous>, transform_indices = @transform_2, window_bounds = array<i64: 1, 4>}, {pipeline_mode = #tpu.pipeline_mode<synchronous>, transform_indices = @transform_3, window_bounds = array<i64: 1, 4>}, {transform_indices = @transform_4, window_bounds = array<i64: 256, 4>}]} {
    %c0 = arith.constant 0 : index
    %c0_0 = arith.constant 0 : index
    %0 = vector.load %arg1[%c0, %c0_0] : memref<256x128xbf16, #tpu.memory_space<vmem>>, vector<256x128xbf16>
    %c0_1 = arith.constant 0 : index
    %c0_2 = arith.constant 0 : index
    %1 = vector.load %arg2[%c0_1, %c0_2] : memref<128x4xbf16, #tpu.memory_space<vmem>>, vector<128x4xbf16>
    %cst = arith.constant dense<0.000000e+00> : vector<256x4xf32>
    %2 = tpu.matmul %0, %1, %cst {dimension_numbers = #tpu.dot_dimension_numbers<[1], [0], [0], [1], [0, 0, 1, 1], [], []>} : vector<256x128xbf16>, vector<128x4xbf16>, vector<256x4xf32> -> vector<256x4xf32>
    %c0_3 = arith.constant 0 : index
    %c0_4 = arith.constant 0 : index
    %3 = vector.load %arg3[%c0_3, %c0_4] : memref<1x4xf32, #tpu.memory_space<vmem>>, vector<1x4xf32>
    %4 = vector.broadcast %3 : vector<1x4xf32> to vector<256x4xf32>
    %5 = arith.mulf %2, %4 : vector<256x4xf32>
    %c0_5 = arith.constant 0 : index
    %c0_6 = arith.constant 0 : index
    %6 = vector.load %arg4[%c0_5, %c0_6] : memref<1x4xf32, #tpu.memory_space<vmem>>, vector<1x4xf32>
    %7 = vector.broadcast %6 : vector<1x4xf32> to vector<256x4xf32>
    %8 = arith.addf %5, %7 : vector<256x4xf32>
    %cst_7 = arith.constant 0.000000e+00 : f32
    %9 = vector.broadcast %cst_7 : f32 to vector<256x4xf32>
    %10 = arith.maximumf %8, %9 : vector<256x4xf32>
    %11 = arith.truncf %10 : vector<256x4xf32> to vector<256x4xbf16>
    %c0_8 = arith.constant 0 : index
    %c0_9 = arith.constant 0 : index
    %12 = vector.load %arg5[%c0_8, %c0_9] : memref<256x4xbf16, #tpu.memory_space<vmem>>, vector<256x4xbf16>
    tpu.vector_store %arg5[%c0_8, %c0_9], %11 {strides = array<i32>} : memref<256x4xbf16, #tpu.memory_space<vmem>>, vector<256x4xbf16>,
    return
  }
  func.func @transform_0(%arg0: i32) -> (i32, i32) {
    %c0_i32 = arith.constant 0 : i32
    %c0_i32_0 = arith.constant 0 : i32
    return %arg0, %c0_i32 : i32, i32
  }
  func.func @transform_1(%arg0: i32) -> (i32, i32) {
    %c0_i32 = arith.constant 0 : i32
    %c0_i32_0 = arith.constant 0 : i32
    %c0_i32_1 = arith.constant 0 : i32
    return %c0_i32, %c0_i32_0 : i32, i32
  }
  func.func @transform_2(%arg0: i32) -> (i32, i32) {
    %c0_i32 = arith.constant 0 : i32
    %c0_i32_0 = arith.constant 0 : i32
    %c0_i32_1 = arith.constant 0 : i32
    return %c0_i32, %c0_i32_0 : i32, i32
  }
  func.func @transform_3(%arg0: i32) -> (i32, i32) {
    %c0_i32 = arith.constant 0 : i32
    %c0_i32_0 = arith.constant 0 : i32
    %c0_i32_1 = arith.constant 0 : i32
    return %c0_i32, %c0_i32_0 : i32, i32
  }
  func.func @transform_4(%arg0: i32) -> (i32, i32) {
    %c0_i32 = arith.constant 0 : i32
    %c0_i32_0 = arith.constant 0 : i32
    return %arg0, %c0_i32 : i32, i32
  }
}

</mosaic_0001>

<llo_original>
// kernel: tpu_custom_call.1
$region0: #{tpu_custom_call.1}
  #allocation0 [shape = 'u32[]', space=smem, size = 0x4, offset = 0x4, fixed_abs, tag = 'smem constant byte address 0x4 - core index']
  #allocation1 [shape = 'u32[72,128]{1,0:T(1,128)}', space=vmem, size = 0x9000, scoped, tag = 'internal scratch']
  %s0 = inlined_call_operand.hbm [shape: bf16[512,128], index: 0, kind: input, shape index: {}]
  %s1 = inlined_call_operand.vmem [shape: bf16[128,4], index: 1, kind: input, shape index: {}]
  %s2 = inlined_call_operand.vmem [shape: f32[1,4], index: 2, kind: input, shape index: {}]
  %s3 = inlined_call_operand.vmem [shape: f32[1,4], index: 3, kind: input, shape index: {}]
  %s4 = inlined_call_operand.vmem [shape: bf16[512,4], index: 4, kind: output, shape index: {}]
  %s5 = sld [smem:[#allocation0]]
  $region53: #{tpu_custom_call.1} parent=0
    _
  %s7 = ssub.s32 1, %s5
  %s8 = scalar_select 0, %s7, %s5
  $region1: #{tpu_custom_call.1} parent=0
    #allocation2 [shape = 'u8[131072]{0}', space=vmem, size = 0x20000, scoped, tag = 'input window, operand 0']
    #allocation3 [shape = 's32[2]{0}', space=sflag, size = 0x8, scoped, tag = 'scoped memory for tpu_custom_call.1']
    %9 = vsyncpa [#allocation3], 0
    %s10 = scalar_lea.sflag [#allocation3], 1
    %11 = vsyncpa %s10, 0
    loop: start=0, step=1, limit=4
    $region2: #{tpu_custom_call.1} parent=1 // loop_pre_header
      _
    $region3: #{tpu_custom_call.1} parent=1 // loop_header
      %s13 = sphi 0, %s17
      %p14 = scmp.ge.s32.totalorder %s13, 4
      %s23 = sphi 0, %s25
      %s26 = sphi 0, %s23
      %s27 = sphi 0, %s26
      %s43 = sphi 0, %s27
      %s47 = sphi 0, %s47
      %s49 = sphi 0, %s47
      %s50 = sphi 0, %s49
      %s64 = sphi 0, %s50
      %s68 = sphi 0, %s68
      %s70 = sphi 0, %s68
      %s71 = sphi 0, %s70
      %s85 = sphi 0, %s71
      %s89 = sphi 0, %s89
      %s91 = sphi 0, %s89
      %s92 = sphi 0, %s91
      %s106 = sphi 0, %s92
      %s112 = sphi 0, %s114
      %s115 = sphi 0, %s112
      %s116 = sphi 0, %s115
      %s132 = sphi 0, %s116
    $region4: #{tpu_custom_call.1} parent=1 // loop_header_branch
      %16 = sbr.rel (%p14) target = $region8
    $region5: #{tpu_custom_call.1} parent=1 // loop_body
      %s18 = ssub.s32 %s13, 1
      %s19 = ssub.s32 %s13, 2
      %s20 = sadd.s32 %s13, 1
      %s21 = ssub.s32 %s13, %s20
      %p22 = scmp.eq.s32.totalorder %s21, 0
      %s24 = sadd.s32 %s23, 1
      %s25 = scalar_select %p22, %s23, %s24
      %p28 = pneg %p22
      %p29 = scmp.eq.s32.totalorder %s13, 1
      %p30 = por %p28, %p29
      %p31 = scmp.ne.s32.totalorder %s23, %s26
      %p32 = scmp.eq.s32.totalorder %s13, 0
      %p33 = por %p31, %p32
      %p34 = scmp.ne.s32.totalorder %s23, %s26
      %p35 = scmp.eq.s32.totalorder %s18, 1
      %p36 = por %p34, %p35
      %p37 = scmp.ne.s32.totalorder %s26, %s27
      %p38 = scmp.eq.s32.totalorder %s18, 0
      %p39 = por %p37, %p38
      %p40 = scmp.ne.s32.totalorder %s26, %s27
      %p41 = scmp.eq.s32.totalorder %s19, 1
      %p42 = por %p40, %p41
      %p44 = scmp.ne.s32.totalorder %s27, %s43
      %p45 = scmp.eq.s32.totalorder %s19, 0
      %p46 = por %p44, %p45
      %s48 = sadd.s32 %s47, 1
      %p51 = scmp.eq.s32.totalorder %s13, 1
      %p52 = scmp.ne.s32.totalorder %s47, %s49
      %p53 = scmp.eq.s32.totalorder %s13, 0
      %p54 = por %p52, %p53
      %p55 = scmp.ne.s32.totalorder %s47, %s49
      %p56 = scmp.eq.s32.totalorder %s18, 1
      %p57 = por %p55, %p56
      %p58 = scmp.ne.s32.totalorder %s49, %s50
      %p59 = scmp.eq.s32.totalorder %s18, 0
      %p60 = por %p58, %p59
      %p61 = scmp.ne.s32.totalorder %s49, %s50
      %p62 = scmp.eq.s32.totalorder %s19, 1
      %p63 = por %p61, %p62
      %p65 = scmp.ne.s32.totalorder %s50, %s64
      %p66 = scmp.eq.s32.totalorder %s19, 0
      %p67 = por %p65, %p66
      %s69 = sadd.s32 %s68, 1
      %p72 = scmp.eq.s32.totalorder %s13, 1
      %p73 = scmp.ne.s32.totalorder %s68, %s70
      %p74 = scmp.eq.s32.totalorder %s13, 0
      %p75 = por %p73, %p74
      %p76 = scmp.ne.s32.totalorder %s68, %s70
      %p77 = scmp.eq.s32.totalorder %s18, 1
      %p78 = por %p76, %p77
      %p79 = scmp.ne.s32.totalorder %s70, %s71
      %p80 = scmp.eq.s32.totalorder %s18, 0
      %p81 = por %p79, %p80
      %p82 = scmp.ne.s32.totalorder %s70, %s71
      %p83 = scmp.eq.s32.totalorder %s19, 1
      %p84 = por %p82, %p83
      %p86 = scmp.ne.s32.totalorder %s71, %s85
      %p87 = scmp.eq.s32.totalorder %s19, 0
      %p88 = por %p86, %p87
      %s90 = sadd.s32 %s89, 1
      %p93 = scmp.eq.s32.totalorder %s13, 1
      %p94 = scmp.ne.s32.totalorder %s89, %s91
      %p95 = scmp.eq.s32.totalorder %s13, 0
      %p96 = por %p94, %p95
      %p97 = scmp.ne.s32.totalorder %s89, %s91
      %p98 = scmp.eq.s32.totalorder %s18, 1
      %p99 = por %p97, %p98
      %p100 = scmp.ne.s32.totalorder %s91, %s92
      %p101 = scmp.eq.s32.totalorder %s18, 0
      %p102 = por %p100, %p101
      %p103 = scmp.ne.s32.totalorder %s91, %s92
      %p104 = scmp.eq.s32.totalorder %s19, 1
      %p105 = por %p103, %p104
      %p107 = scmp.ne.s32.totalorder %s92, %s106
      %p108 = scmp.eq.s32.totalorder %s19, 0
      %p109 = por %p107, %p108
      %s110 = ssub.s32 %s13, %s20
      %p111 = scmp.eq.s32.totalorder %s110, 0
      %s113 = sadd.s32 %s112, 1
      %s114 = scalar_select %p111, %s112, %s113
      %p117 = pneg %p111
      %p118 = scmp.eq.s32.totalorder %s13, 1
      %p119 = por %p117, %p118
      %p120 = scmp.ne.s32.totalorder %s112, %s115
      %p121 = scmp.eq.s32.totalorder %s13, 0
      %p122 = por %p120, %p121
      %p123 = scmp.ne.s32.totalorder %s112, %s115
      %p124 = scmp.eq.s32.totalorder %s18, 1
      %p125 = por %p123, %p124
      %p126 = scmp.ne.s32.totalorder %s115, %s116
      %p127 = scmp.eq.s32.totalorder %s18, 0
      %p128 = por %p126, %p127
      %p129 = scmp.ne.s32.totalorder %s115, %s116
      %p130 = scmp.eq.s32.totalorder %s19, 1
      %p131 = por %p129, %p130
      %p133 = scmp.ne.s32.totalorder %s116, %s132
      %p134 = scmp.eq.s32.totalorder %s19, 0
      %p135 = por %p133, %p134
      %p136 = scmp.le.s32.totalorder 1, %s13
      %p137 = scmp.lt.s32.totalorder %s13, 3
      %p138 = pnand %p136, %p137
      %p139 = pneg %p138
      // Predicated region
      $region9: #{tpu_custom_call.1} parent=5 // pred_check
        _
      $region10: #{tpu_custom_call.1} parent=5 // pred_check_branch
        %141 = sbr.rel (%p138) target = $region12
      $region11: #{tpu_custom_call.1} parent=5 // pred_region
        %s142 = ssub.s32 %s13, 1
        // Predicated region
        $region13: #{tpu_custom_call.1} parent=11 // pred_check
          %p143 = pneg %p60
        $region14: #{tpu_custom_call.1} parent=11 // pred_check_branch
          %145 = sbr.rel (%p143) target = $region16
        $region15: #{tpu_custom_call.1} parent=11 // pred_region
          _
        $region16: #{tpu_custom_call.1} parent=11 // pred_fallthru
          _
        // Predicated region
        $region17: #{tpu_custom_call.1} parent=11 // pred_check
          %p146 = pneg %p81
        $region18: #{tpu_custom_call.1} parent=11 // pred_check_branch
          %148 = sbr.rel (%p146) target = $region20
        $region19: #{tpu_custom_call.1} parent=11 // pred_region
          _
        $region20: #{tpu_custom_call.1} parent=11 // pred_fallthru
          _
        // Predicated region
        $region21: #{tpu_custom_call.1} parent=11 // pred_check
          %p149 = pneg %p102
        $region22: #{tpu_custom_call.1} parent=11 // pred_check_branch
          %151 = sbr.rel (%p149) target = $region24
        $region23: #{tpu_custom_call.1} parent=11 // pred_region
          _
        $region24: #{tpu_custom_call.1} parent=11 // pred_fallthru
          _
      $region12: #{tpu_custom_call.1} parent=5 // pred_fallthru
        _
      %p152 = scmp.lt.s32.totalorder %s13, 2
      // Predicated region
      $region25: #{tpu_custom_call.1} parent=5 // pred_check
        %p153 = pneg %p152
      $region26: #{tpu_custom_call.1} parent=5 // pred_check_branch
        %155 = sbr.rel (%p153) target = $region28
      $region27: #{tpu_custom_call.1} parent=5 // pred_region
        // Predicated region
        $region29: #{tpu_custom_call.1} parent=27 // pred_check
          %p156 = pneg %p33
        $region30: #{tpu_custom_call.1} parent=27 // pred_check_branch
          %158 = sbr.rel (%p156) target = $region32
        $region31: #{tpu_custom_call.1} parent=27 // pred_region
          %s159 = sand.u32 %s23, 1
          %s160 = scalar_lea.sflag [#allocation3], %s159
          %s161 = sand.u32 %s23, 1
          %s162 = smul.addr %s161, 128
          %s163 = scalar_lea.vmem [#allocation2], %s162
          %s164 = smul.u32 32, %s13
          %166 = vsyncadd %s160, 0
          %s167 = smul.addr %s164, 4
          %s168 = scalar_lea.hbm %s0, %s167
          %s169 = sshll.u32 %s168, 4
          %s170 = int_to_ptr.hbm [resolvable:$true] %s169
          %s171 = sshll.u32 %s163, 4
          %s172 = int_to_ptr.vmem [resolvable:$true] %s171
          %177 = dma.hbm_to_vmem [thread:$0]  %s170, 2048, %s172, %s160, 64, 64, 4
        $region32: #{tpu_custom_call.1} parent=27 // pred_fallthru
          _
      $region28: #{tpu_custom_call.1} parent=5 // pred_fallthru
        _
      %p178 = scmp.le.s32.totalorder 1, %s13
      %p179 = scmp.lt.s32.totalorder %s13, 3
      %p180 = pnand %p178, %p179
      %p181 = pneg %p180
      // Predicated region
      $region33: #{tpu_custom_call.1} parent=5 // pred_check
        _
      $region34: #{tpu_custom_call.1} parent=5 // pred_check_branch
        %183 = sbr.rel (%p180) target = $region36
      $region35: #{tpu_custom_call.1} parent=5 // pred_region
        %s184 = ssub.s32 %s13, 1
        %s185 = sand.u32 %s26, 1
        %s186 = scalar_lea.sflag [#allocation3], %s185
        %s187 = sand.u32 %s26, 1
        %s188 = smul.addr %s187, 128
        %s189 = scalar_lea.vmem [#allocation2], %s188
        // Predicated region
        $region37: #{tpu_custom_call.1} parent=35 // pred_check
          %p190 = pneg %p39
        $region38: #{tpu_custom_call.1} parent=35 // pred_check_branch
          %192 = sbr.rel (%p190) target = $region40
        $region39: #{tpu_custom_call.1} parent=35 // pred_region
          %194 = dma.done %s186, 2048
        $region40: #{tpu_custom_call.1} parent=35 // pred_fallthru
          _
        %s195 = sand.u32 %s26, 1
        %s196 = scalar_lea.sflag [#allocation3], %s195
        %s197 = sand.u32 %s26, 1
        %s198 = smul.addr %s197, 128
        %s199 = scalar_lea.vmem [#allocation2], %s198
        %p200 = pneg %p39
        %p201 = pneg %p36
        %p202 = pneg %p60
        %p203 = pneg %p57
        %p204 = pneg %p81
        %p205 = pneg %p78
        %p206 = pneg %p102
        %p207 = pneg %p99
        %p208 = pneg %p128
        %p209 = pneg %p125
        %s210 = smul.u32 32, %s18
        %p211 = scmp.lt.s32.totalorder %s210, 63
        %s212 = scalar_select %p211, %s210, 63
        %s213 = smul.addr %s212, 4
        %s214 = scalar_lea.vmem %s4, %s213
        %s215 = smul.u32 32, %s18
        %s216 = smul.u32 32, %s18
        %p217 = scmp.lt.s32.totalorder %s216, 63
        %s218 = scalar_select %p217, %s216, 63
        %s219 = smul.addr %s218, 4
        %s220 = scalar_lea.vmem %s4, %s219
        %s221 = smul.u32 32, %s18
        %v222 = vld [vmem:[%s189] sm:$0xf]
        %v223 = vld [vmem:[%s189 + $0x4] sm:$0xf]
        %v224 = vld [vmem:[%s189 + $0x8] sm:$0xf]
        %v225 = vld [vmem:[%s189 + $0xc] sm:$0xf]
        %v226 = vld [vmem:[%s189 + $0x10] sm:$0xf]
        %v227 = vld [vmem:[%s189 + $0x14] sm:$0xf]
        %v228 = vld [vmem:[%s189 + $0x18] sm:$0xf]
        %v229 = vld [vmem:[%s189 + $0x1c] sm:$0xf]
        %v230 = vld [vmem:[%s189 + $0x20] sm:$0xf]
        %v231 = vld [vmem:[%s189 + $0x24] sm:$0xf]
        %v232 = vld [vmem:[%s189 + $0x28] sm:$0xf]
        %v233 = vld [vmem:[%s189 + $0x2c] sm:$0xf]
        %v234 = vld [vmem:[%s189 + $0x30] sm:$0xf]
        %v235 = vld [vmem:[%s189 + $0x34] sm:$0xf]
        %v236 = vld [vmem:[%s189 + $0x38] sm:$0xf]
        %v237 = vld [vmem:[%s189 + $0x3c] sm:$0xf]
        %v238 = vld [vmem:[%s189 + $0x40] sm:$0xf]
        %v239 = vld [vmem:[%s189 + $0x44] sm:$0xf]
        %v240 = vld [vmem:[%s189 + $0x48] sm:$0xf]
        %v241 = vld [vmem:[%s189 + $0x4c] sm:$0xf]
        %v242 = vld [vmem:[%s189 + $0x50] sm:$0xf]
        %v243 = vld [vmem:[%s189 + $0x54] sm:$0xf]
        %v244 = vld [vmem:[%s189 + $0x58] sm:$0xf]
        %v245 = vld [vmem:[%s189 + $0x5c] sm:$0xf]
        %v246 = vld [vmem:[%s189 + $0x60] sm:$0xf]
        %v247 = vld [vmem:[%s189 + $0x64] sm:$0xf]
        %v248 = vld [vmem:[%s189 + $0x68] sm:$0xf]
        %v249 = vld [vmem:[%s189 + $0x6c] sm:$0xf]
        %v250 = vld [vmem:[%s189 + $0x70] sm:$0xf]
        %v251 = vld [vmem:[%s189 + $0x74] sm:$0xf]
        %v252 = vld [vmem:[%s189 + $0x78] sm:$0xf]
        %v253 = vld [vmem:[%s189 + $0x7c] sm:$0xf]
        %v254 = vld [vmem:[%s1] sm:$0xf]
        %v255 = vld [vmem:[%s1 + $0x4] sm:$0xf]
        %v256 = vld [vmem:[%s1 + $0x8] sm:$0xf]
        %v257 = vld [vmem:[%s1 + $0xc] sm:$0xf]
        %v258 = vld [vmem:[%s1 + $0x10] sm:$0xf]
        %v259 = vld [vmem:[%s1 + $0x14] sm:$0xf]
        %v260 = vld [vmem:[%s1 + $0x18] sm:$0xf]
        %v261 = vld [vmem:[%s1 + $0x1c] sm:$0xf]
        %v262 = vld [vmem:[%s1 + $0x20] sm:$0xf]
        %v263 = vld [vmem:[%s1 + $0x24] sm:$0xf]
        %v264 = vld [vmem:[%s1 + $0x28] sm:$0xf]
        %v265 = vld [vmem:[%s1 + $0x2c] sm:$0xf]
        %v266 = vld [vmem:[%s1 + $0x30] sm:$0xf]
        %v267 = vld [vmem:[%s1 + $0x34] sm:$0xf]
        %v268 = vld [vmem:[%s1 + $0x38] sm:$0xf]
        %v269 = vld [vmem:[%s1 + $0x3c] sm:$0xf]
        %v302 = vunpack.c.l.b16 %v222
        %v303 = vunpack.c.l.b16 %v223
        %v304 = vunpack.c.l.b16 %v224
        %v305 = vunpack.c.l.b16 %v225
        %v306 = vunpack.c.l.b16 %v226
        %v307 = vunpack.c.l.b16 %v227
        %v308 = vunpack.c.l.b16 %v228
        %v309 = vunpack.c.l.b16 %v229
        %v310 = vunpack.c.l.b16 %v230
        %v311 = vunpack.c.l.b16 %v231
        %v312 = vunpack.c.l.b16 %v232
        %v313 = vunpack.c.l.b16 %v233
        %v314 = vunpack.c.l.b16 %v234
        %v315 = vunpack.c.l.b16 %v235
        %v316 = vunpack.c.l.b16 %v236
        %v317 = vunpack.c.l.b16 %v237
        %v318 = vunpack.c.l.b16 %v238
        %v319 = vunpack.c.l.b16 %v239
        %v320 = vunpack.c.l.b16 %v240
        %v321 = vunpack.c.l.b16 %v241
        %v322 = vunpack.c.l.b16 %v242
        %v323 = vunpack.c.l.b16 %v243
        %v324 = vunpack.c.l.b16 %v244
        %v325 = vunpack.c.l.b16 %v245
        %v326 = vunpack.c.l.b16 %v246
        %v327 = vunpack.c.l.b16 %v247
        %v328 = vunpack.c.l.b16 %v248
        %v329 = vunpack.c.l.b16 %v249
        %v330 = vunpack.c.l.b16 %v250
        %v331 = vunpack.c.l.b16 %v251
        %v332 = vunpack.c.l.b16 %v252
        %v333 = vunpack.c.l.b16 %v253
        %v334 = vpack.c.b16 %v303, %v302
        %v335 = vpack.c.b16 %v305, %v304
        %v336 = vpack.c.b16 %v307, %v306
        %v337 = vpack.c.b16 %v309, %v308
        %v338 = vpack.c.b16 %v311, %v310
        %v339 = vpack.c.b16 %v313, %v312
        %v340 = vpack.c.b16 %v315, %v314
        %v341 = vpack.c.b16 %v317, %v316
        %v342 = vpack.c.b16 %v319, %v318
        %v343 = vpack.c.b16 %v321, %v320
        %v344 = vpack.c.b16 %v323, %v322
        %v345 = vpack.c.b16 %v325, %v324
        %v346 = vpack.c.b16 %v327, %v326
        %v347 = vpack.c.b16 %v329, %v328
        %v348 = vpack.c.b16 %v331, %v330
        %v349 = vpack.c.b16 %v333, %v332
        %v382 = vunpack.c.l.b16 %v254
        %v383 = vunpack.c.l.b16 %v255
        %v384 = vunpack.c.l.b16 %v256
        %v385 = vunpack.c.l.b16 %v257
        %v386 = vunpack.c.l.b16 %v258
        %v387 = vunpack.c.l.b16 %v259
        %v388 = vunpack.c.l.b16 %v260
        %v389 = vunpack.c.l.b16 %v261
        %v390 = vunpack.c.l.b16 %v262
        %v391 = vunpack.c.l.b16 %v263
        %v392 = vunpack.c.l.b16 %v264
        %v393 = vunpack.c.l.b16 %v265
        %v394 = vunpack.c.l.b16 %v266
        %v395 = vunpack.c.l.b16 %v267
        %v396 = vunpack.c.l.b16 %v268
        %v397 = vunpack.c.l.b16 %v269
        %v398 = vpack.c.b16 %v383, %v382
        %v399 = vpack.c.b16 %v385, %v384
        %v400 = vpack.c.b16 %v387, %v386
        %v401 = vpack.c.b16 %v389, %v388
        %v402 = vpack.c.b16 %v391, %v390
        %v403 = vpack.c.b16 %v393, %v392
        %v404 = vpack.c.b16 %v395, %v394
        %v405 = vpack.c.b16 %v397, %v396
        %414 = vmatpush.bf16.msra.mxu0 %v405
        %415 = vmatpush.bf16.msra.mxu0 %v404
        %416 = vmatpush.bf16.msra.mxu0 %v403
        %417 = vmatpush.bf16.msra.mxu0 %v402
        %418 = vmatpush.bf16.msra.mxu0 %v401
        %419 = vmatpush.bf16.msra.mxu0 %v400
        %420 = vmatpush.bf16.msra.mxu0 %v399
        %421 = vmatpush.bf16.msra.mxu0 %v398
        %422 = vmatmul.bf16.gmra.mxu0 %v334
        %v423 = vpop.f32.mrf.mxu0
        %v424 = vadd.f32 0.0, %v423
        %v425 = vpop.f32.mrf.mxu0
        %v426 = vadd.f32 0.0, %v425
        %427 = vmatmul.bf16.gmra.mxu0 %v335
        %v428 = vpop.f32.mrf.mxu0
        %v429 = vadd.f32 0.0, %v428
        %v430 = vpop.f32.mrf.mxu0
        %v431 = vadd.f32 0.0, %v430
        %432 = vmatmul.bf16.gmra.mxu0 %v336
        %v433 = vpop.f32.mrf.mxu0
        %v434 = vadd.f32 0.0, %v433
        %v435 = vpop.f32.mrf.mxu0
        %v436 = vadd.f32 0.0, %v435
        %437 = vmatmul.bf16.gmra.mxu0 %v337
        %v438 = vpop.f32.mrf.mxu0
        %v439 = vadd.f32 0.0, %v438
        %v440 = vpop.f32.mrf.mxu0
        %v441 = vadd.f32 0.0, %v440
        %442 = vmatmul.bf16.gmra.mxu0 %v338
        %v443 = vpop.f32.mrf.mxu0
        %v444 = vadd.f32 0.0, %v443
        %v445 = vpop.f32.mrf.mxu0
        %v446 = vadd.f32 0.0, %v445
        %447 = vmatmul.bf16.gmra.mxu0 %v339
        %v448 = vpop.f32.mrf.mxu0
        %v449 = vadd.f32 0.0, %v448
        %v450 = vpop.f32.mrf.mxu0
        %v451 = vadd.f32 0.0, %v450
        %452 = vmatmul.bf16.gmra.mxu0 %v340
        %v453 = vpop.f32.mrf.mxu0
        %v454 = vadd.f32 0.0, %v453
        %v455 = vpop.f32.mrf.mxu0
        %v456 = vadd.f32 0.0, %v455
        %457 = vmatmul.bf16.gmra.mxu0 %v341
        %v458 = vpop.f32.mrf.mxu0
        %v459 = vadd.f32 0.0, %v458
        %v460 = vpop.f32.mrf.mxu0
        %v461 = vadd.f32 0.0, %v460
        %462 = vmatmul.bf16.gmra.mxu0 %v342
        %v463 = vpop.f32.mrf.mxu0
        %v464 = vadd.f32 0.0, %v463
        %v465 = vpop.f32.mrf.mxu0
        %v466 = vadd.f32 0.0, %v465
        %467 = vmatmul.bf16.gmra.mxu0 %v343
        %v468 = vpop.f32.mrf.mxu0
        %v469 = vadd.f32 0.0, %v468
        %v470 = vpop.f32.mrf.mxu0
        %v471 = vadd.f32 0.0, %v470
        %472 = vmatmul.bf16.gmra.mxu0 %v344
        %v473 = vpop.f32.mrf.mxu0
        %v474 = vadd.f32 0.0, %v473
        %v475 = vpop.f32.mrf.mxu0
        %v476 = vadd.f32 0.0, %v475
        %477 = vmatmul.bf16.gmra.mxu0 %v345
        %v478 = vpop.f32.mrf.mxu0
        %v479 = vadd.f32 0.0, %v478
        %v480 = vpop.f32.mrf.mxu0
        %v481 = vadd.f32 0.0, %v480
        %482 = vmatmul.bf16.gmra.mxu0 %v346
        %v483 = vpop.f32.mrf.mxu0
        %v484 = vadd.f32 0.0, %v483
        %v485 = vpop.f32.mrf.mxu0
        %v486 = vadd.f32 0.0, %v485
        %487 = vmatmul.bf16.gmra.mxu0 %v347
        %v488 = vpop.f32.mrf.mxu0
        %v489 = vadd.f32 0.0, %v488
        %v490 = vpop.f32.mrf.mxu0
        %v491 = vadd.f32 0.0, %v490
        %492 = vmatmul.bf16.gmra.mxu0 %v348
        %v493 = vpop.f32.mrf.mxu0
        %v494 = vadd.f32 0.0, %v493
        %v495 = vpop.f32.mrf.mxu0
        %v496 = vadd.f32 0.0, %v495
        %497 = vmatmul.bf16.gmra.mxu0 %v349
        %v498 = vpop.f32.mrf.mxu0
        %v499 = vadd.f32 0.0, %v498
        %v500 = vpop.f32.mrf.mxu0
        %v501 = vadd.f32 0.0, %v500
        %502 = vdwg.mxu0
        %v503 = vld [vmem:[%s2] sm:$0x1]
        %v505 = vperm.slane %v503, 0
        %v507 = vmul.f32 %v424, %v505
        %v508 = vmul.f32 %v426, %v505
        %v509 = vmul.f32 %v429, %v505
        %v510 = vmul.f32 %v431, %v505
        %v511 = vmul.f32 %v434, %v505
        %v512 = vmul.f32 %v436, %v505
        %v513 = vmul.f32 %v439, %v505
        %v514 = vmul.f32 %v441, %v505
        %v515 = vmul.f32 %v444, %v505
        %v516 = vmul.f32 %v446, %v505
        %v517 = vmul.f32 %v449, %v505
        %v518 = vmul.f32 %v451, %v505
        %v519 = vmul.f32 %v454, %v505
        %v520 = vmul.f32 %v456, %v505
        %v521 = vmul.f32 %v459, %v505
        %v522 = vmul.f32 %v461, %v505
        %v523 = vmul.f32 %v464, %v505
        %v524 = vmul.f32 %v466, %v505
        %v525 = vmul.f32 %v469, %v505
        %v526 = vmul.f32 %v471, %v505
        %v527 = vmul.f32 %v474, %v505
        %v528 = vmul.f32 %v476, %v505
        %v529 = vmul.f32 %v479, %v505
        %v530 = vmul.f32 %v481, %v505
        %v531 = vmul.f32 %v484, %v505
        %v532 = vmul.f32 %v486, %v505
        %v533 = vmul.f32 %v489, %v505
        %v534 = vmul.f32 %v491, %v505
        %v535 = vmul.f32 %v494, %v505
        %v536 = vmul.f32 %v496, %v505
        %v537 = vmul.f32 %v499, %v505
        %v538 = vmul.f32 %v501, %v505
        %v539 = vld [vmem:[%s3] sm:$0x1]
        %v541 = vperm.slane %v539, 0
        %v543 = vadd.f32 %v507, %v541
        %v544 = vadd.f32 %v508, %v541
        %v545 = vadd.f32 %v509, %v541
        %v546 = vadd.f32 %v510, %v541
        %v547 = vadd.f32 %v511, %v541
        %v548 = vadd.f32 %v512, %v541
        %v549 = vadd.f32 %v513, %v541
        %v550 = vadd.f32 %v514, %v541
        %v551 = vadd.f32 %v515, %v541
        %v552 = vadd.f32 %v516, %v541
        %v553 = vadd.f32 %v517, %v541
        %v554 = vadd.f32 %v518, %v541
        %v555 = vadd.f32 %v519, %v541
        %v556 = vadd.f32 %v520, %v541
        %v557 = vadd.f32 %v521, %v541
        %v558 = vadd.f32 %v522, %v541
        %v559 = vadd.f32 %v523, %v541
        %v560 = vadd.f32 %v524, %v541
        %v561 = vadd.f32 %v525, %v541
        %v562 = vadd.f32 %v526, %v541
        %v563 = vadd.f32 %v527, %v541
        %v564 = vadd.f32 %v528, %v541
        %v565 = vadd.f32 %v529, %v541
        %v566 = vadd.f32 %v530, %v541
        %v567 = vadd.f32 %v531, %v541
        %v568 = vadd.f32 %v532, %v541
        %v569 = vadd.f32 %v533, %v541
        %v570 = vadd.f32 %v534, %v541
        %v571 = vadd.f32 %v535, %v541
        %v572 = vadd.f32 %v536, %v541
        %v573 = vadd.f32 %v537, %v541
        %v574 = vadd.f32 %v538, %v541
        %v575 = vmax.f32 %v543, 0.0
        %v576 = vmax.f32 %v544, 0.0
        %v577 = vmax.f32 %v545, 0.0
        %v578 = vmax.f32 %v546, 0.0
        %v579 = vmax.f32 %v547, 0.0
        %v580 = vmax.f32 %v548, 0.0
        %v581 = vmax.f32 %v549, 0.0
        %v582 = vmax.f32 %v550, 0.0
        %v583 = vmax.f32 %v551, 0.0
        %v584 = vmax.f32 %v552, 0.0
        %v585 = vmax.f32 %v553, 0.0
        %v586 = vmax.f32 %v554, 0.0
        %v587 = vmax.f32 %v555, 0.0
        %v588 = vmax.f32 %v556, 0.0
        %v589 = vmax.f32 %v557, 0.0
        %v590 = vmax.f32 %v558, 0.0
        %v591 = vmax.f32 %v559, 0.0
        %v592 = vmax.f32 %v560, 0.0
        %v593 = vmax.f32 %v561, 0.0
        %v594 = vmax.f32 %v562, 0.0
        %v595 = vmax.f32 %v563, 0.0
        %v596 = vmax.f32 %v564, 0.0
        %v597 = vmax.f32 %v565, 0.0
        %v598 = vmax.f32 %v566, 0.0
        %v599 = vmax.f32 %v567, 0.0
        %v600 = vmax.f32 %v568, 0.0
        %v601 = vmax.f32 %v569, 0.0
        %v602 = vmax.f32 %v570, 0.0
        %v603 = vmax.f32 %v571, 0.0
        %v604 = vmax.f32 %v572, 0.0
        %v605 = vmax.f32 %v573, 0.0
        %v606 = vmax.f32 %v574, 0.0
        %v607 = vpack.c.bf16 %v575, %v575
        %v608 = vpack.c.bf16 %v576, %v576
        %v609 = vpack.c.bf16 %v577, %v577
        %v610 = vpack.c.bf16 %v578, %v578
        %v611 = vpack.c.bf16 %v579, %v579
        %v612 = vpack.c.bf16 %v580, %v580
        %v613 = vpack.c.bf16 %v581, %v581
        %v614 = vpack.c.bf16 %v582, %v582
        %v615 = vpack.c.bf16 %v583, %v583
        %v616 = vpack.c.bf16 %v584, %v584
        %v617 = vpack.c.bf16 %v585, %v585
        %v618 = vpack.c.bf16 %v586, %v586
        %v619 = vpack.c.bf16 %v587, %v587
        %v620 = vpack.c.bf16 %v588, %v588
        %v621 = vpack.c.bf16 %v589, %v589
        %v622 = vpack.c.bf16 %v590, %v590
        %v623 = vpack.c.bf16 %v591, %v591
        %v624 = vpack.c.bf16 %v592, %v592
        %v625 = vpack.c.bf16 %v593, %v593
        %v626 = vpack.c.bf16 %v594, %v594
        %v627 = vpack.c.bf16 %v595, %v595
        %v628 = vpack.c.bf16 %v596, %v596
        %v629 = vpack.c.bf16 %v597, %v597
        %v630 = vpack.c.bf16 %v598, %v598
        %v631 = vpack.c.bf16 %v599, %v599
        %v632 = vpack.c.bf16 %v600, %v600
        %v633 = vpack.c.bf16 %v601, %v601
        %v634 = vpack.c.bf16 %v602, %v602
        %v635 = vpack.c.bf16 %v603, %v603
        %v636 = vpack.c.bf16 %v604, %v604
        %v637 = vpack.c.bf16 %v605, %v605
        %v638 = vpack.c.bf16 %v606, %v606
        %vm639 = vcmask 27648
        %640 = vst.msk [vmem:[%s220] sm:$0xf] %vm639, %v607
        %641 = vst.msk [vmem:[%s220 + $0x4] sm:$0xf] %vm639, %v608
        %642 = vst.msk [vmem:[%s220 + $0x8] sm:$0xf] %vm639, %v609
        %643 = vst.msk [vmem:[%s220 + $0xc] sm:$0xf] %vm639, %v610
        %644 = vst.msk [vmem:[%s220 + $0x10] sm:$0xf] %vm639, %v611
        %645 = vst.msk [vmem:[%s220 + $0x14] sm:$0xf] %vm639, %v612
        %646 = vst.msk [vmem:[%s220 + $0x18] sm:$0xf] %vm639, %v613
        %647 = vst.msk [vmem:[%s220 + $0x1c] sm:$0xf] %vm639, %v614
        %648 = vst.msk [vmem:[%s220 + $0x20] sm:$0xf] %vm639, %v615
        %649 = vst.msk [vmem:[%s220 + $0x24] sm:$0xf] %vm639, %v616
        %650 = vst.msk [vmem:[%s220 + $0x28] sm:$0xf] %vm639, %v617
        %651 = vst.msk [vmem:[%s220 + $0x2c] sm:$0xf] %vm639, %v618
        %652 = vst.msk [vmem:[%s220 + $0x30] sm:$0xf] %vm639, %v619
        %653 = vst.msk [vmem:[%s220 + $0x34] sm:$0xf] %vm639, %v620
        %654 = vst.msk [vmem:[%s220 + $0x38] sm:$0xf] %vm639, %v621
        %655 = vst.msk [vmem:[%s220 + $0x3c] sm:$0xf] %vm639, %v622
        %656 = vst.msk [vmem:[%s220 + $0x40] sm:$0xf] %vm639, %v623
        %657 = vst.msk [vmem:[%s220 + $0x44] sm:$0xf] %vm639, %v624
        %658 = vst.msk [vmem:[%s220 + $0x48] sm:$0xf] %vm639, %v625
        %659 = vst.msk [vmem:[%s220 + $0x4c] sm:$0xf] %vm639, %v626
        %660 = vst.msk [vmem:[%s220 + $0x50] sm:$0xf] %vm639, %v627
        %661 = vst.msk [vmem:[%s220 + $0x54] sm:$0xf] %vm639, %v628
        %662 = vst.msk [vmem:[%s220 + $0x58] sm:$0xf] %vm639, %v629
        %663 = vst.msk [vmem:[%s220 + $0x5c] sm:$0xf] %vm639, %v630
        %664 = vst.msk [vmem:[%s220 + $0x60] sm:$0xf] %vm639, %v631
        %665 = vst.msk [vmem:[%s220 + $0x64] sm:$0xf] %vm639, %v632
        %666 = vst.msk [vmem:[%s220 + $0x68] sm:$0xf] %vm639, %v633
        %667 = vst.msk [vmem:[%s220 + $0x6c] sm:$0xf] %vm639, %v634
        %668 = vst.msk [vmem:[%s220 + $0x70] sm:$0xf] %vm639, %v635
        %669 = vst.msk [vmem:[%s220 + $0x74] sm:$0xf] %vm639, %v636
        %670 = vst.msk [vmem:[%s220 + $0x78] sm:$0xf] %vm639, %v637
        %671 = vst.msk [vmem:[%s220 + $0x7c] sm:$0xf] %vm639, %v638
        %s672 = smul.u32 32, %s18
        %p673 = scmp.lt.s32.totalorder %s672, 63
        %s674 = scalar_select %p673, %s672, 63
        %s675 = smul.addr %s674, 4
        %s676 = scalar_lea.vmem %s4, %s675
        // Predicated region
        $region41: #{tpu_custom_call.1} parent=35 // pred_check
          %p677 = pneg %p125
        $region42: #{tpu_custom_call.1} parent=35 // pred_check_branch
          %679 = sbr.rel (%p677) target = $region44
        $region43: #{tpu_custom_call.1} parent=35 // pred_region
          %s680 = smul.u32 32, %s18
        $region44: #{tpu_custom_call.1} parent=35 // pred_fallthru
          _
      $region36: #{tpu_custom_call.1} parent=5 // pred_fallthru
        _
      %p681 = scmp.le.s32.totalorder 2, %s13
      // Predicated region
      $region45: #{tpu_custom_call.1} parent=5 // pred_check
        %p682 = pneg %p681
      $region46: #{tpu_custom_call.1} parent=5 // pred_check_branch
        %684 = sbr.rel (%p682) target = $region48
      $region47: #{tpu_custom_call.1} parent=5 // pred_region
        %s685 = ssub.s32 %s13, 2
        // Predicated region
        $region49: #{tpu_custom_call.1} parent=47 // pred_check
          %p686 = pneg %p131
        $region50: #{tpu_custom_call.1} parent=47 // pred_check_branch
          %688 = sbr.rel (%p686) target = $region52
        $region51: #{tpu_custom_call.1} parent=47 // pred_region
          %s689 = smul.u32 32, %s19
          %p690 = scmp.lt.s32.totalorder %s689, 63
          %s691 = scalar_select %p690, %s689, 63
          %s692 = smul.addr %s691, 4
          %s693 = scalar_lea.vmem %s4, %s692
        $region52: #{tpu_custom_call.1} parent=47 // pred_fallthru
          _
      $region48: #{tpu_custom_call.1} parent=5 // pred_fallthru
        _
    $region6: #{tpu_custom_call.1} parent=1 // loop_footer
      %s17 = sadd.s32 1, %s13
    $region7: #{tpu_custom_call.1} parent=1 // loop_footer_branch
      %12 = sbr.rel target = $region3
    $region8: #{tpu_custom_call.1} parent=1 // loop_exit
      _
    %694 = vsyncpa [#allocation3], 1
    %s695 = scalar_lea.sflag [#allocation3], 1
    %696 = vsyncpa %s695, 1

</llo_original>
